<compile_context>
chip_gen: v7x
topology: tpu7x:2x2x1
jax: 0.10.0
libtpu: 0.0.40
codegen_flags: <defaults>
</compile_context>

<pallas_src>
import jax
import jax.numpy as jnp
from jax.experimental import pallas as pl
from jax.experimental.pallas import tpu as pltpu


def make_pe_table(max_seq_len: int, d_model: int) -> jnp.ndarray:
    """Deterministic sinusoidal table, matches the PyTorch __init__ formula."""
    assert d_model % 2 == 0
    i_seq = jnp.linspace(0.0, max_seq_len - 1, max_seq_len)       # positions
    j_seq = jnp.linspace(0.0, d_model - 2, d_model // 2)          # 0,2,...,D-2
    pos, two_i = jnp.meshgrid(i_seq, j_seq, indexing="ij")        # torch default 'ij'
    angle = pos / (10000.0 ** (two_i / d_model))
    pe = jnp.stack((jnp.sin(angle), jnp.cos(angle)), axis=2).reshape(
        max_seq_len, d_model)
    return pe.astype(jnp.float32)


def _pe_gather_kernel(t_ref, pe_ref, out_ref):
    # t_ref  : (B,)   int32   SMEM (scalar prefetch)
    # pe_ref : (L, D) float32 VMEM -- full table staged by BlockSpec.
    # out_ref: (B, D) float32 VMEM -- single dense output block.
    B = out_ref.shape[0]
    for b in range(B):                       # B is small & static -> unrolled row copies
        out_ref[b, :] = pe_ref[t_ref[b], :]  # dynamic first-axis gather from VMEM


def positional_encoding_lookup(pe: jnp.ndarray, t: jnp.ndarray) -> jnp.ndarray:
    """Pallas equivalent of PositionalEncoding.forward(t)."""
    B = t.shape[0]
    L, D = pe.shape

    # Clamp: Pallas does not bounds-check; PyTorch's nn.Embedding would raise
    # on OOB, so at least make OOB deterministic.
    t_idx = jnp.clip(t.astype(jnp.int32), 0, L - 1)

    return pl.pallas_call(
        _pe_gather_kernel,
        out_shape=jax.ShapeDtypeStruct((B, D), pe.dtype),
        grid_spec=pltpu.PrefetchScalarGridSpec(
            num_scalar_prefetch=1,                         # t -> SMEM
            grid=(1,),                                     # single invocation
            in_specs=[
                # whole table as one VMEM block (block == full array dims,
                # so no (8,128) divisibility constraint applies)
                pl.BlockSpec((L, D), lambda i, t_ref: (0, 0)),
            ],
            out_specs=pl.BlockSpec((B, D), lambda i, t_ref: (0, 0)),
        ),
        compiler_params=pltpu.CompilerParams(
            # size-1 grid: nothing to shard across cores, keep it "arbitrary"
            dimension_semantics=("arbitrary",)),
    )(t_idx, pe)


if __name__ == "__main__":
    max_seq_len, d_model = 64, 128     # D multiple of 128 -> lane-dense output
    batch = 8                          # multiple of 8 -> full f32 sublane tiles

    pe = make_pe_table(max_seq_len, d_model)

    key = jax.random.PRNGKey(0)
    t = jax.random.randint(key, (batch,), 0, max_seq_len, dtype=jnp.int32)

    out = positional_encoding_lookup(pe, t)
    out = jax.block_until_ready(out)

    # sanity check against a pure-JAX reference (jnp.take == embedding lookup)
    ref = jnp.take(pe, t, axis=0)
    assert out.shape == (batch, d_model)
    assert out.dtype == jnp.float32
    assert jnp.allclose(out, ref)

    print("KERNEL_OK")
</pallas_src>

<mosaic_0001>
module attributes {stable_mosaic.version = 11 : i64} {
  func.func @_pe_gather_kernel(%arg0: i32, %arg1: memref<8xi32, #tpu.memory_space<smem>>, %arg2: memref<64x128xf32, #tpu.memory_space<vmem>>, %arg3: memref<8x128xf32, #tpu.memory_space<vmem>>) attributes {dimension_semantics = [#tpu.dimension_semantics<arbitrary>], iteration_bounds = array<i64: 1>, scalar_prefetch = 1 : i64, scratch_operands = 0 : i64, tpu.core_type = #tpu.core_type<tc>, window_params = [{pipeline_mode = #tpu.pipeline_mode<synchronous>, transform_indices = @transform_0, window_bounds = array<i64: 64, 128>}, {pipeline_mode = #tpu.pipeline_mode<synchronous>, transform_indices = @transform_1, window_bounds = array<i64: 8, 128>}]} {
    %c0 = arith.constant 0 : index
    %0 = memref.load %arg1[%c0] : memref<8xi32, #tpu.memory_space<smem>>
    %1 = arith.index_cast %0 : i32 to index
    %c0_0 = arith.constant 0 : index
    %2 = vector.load %arg2[%1, %c0_0] : memref<64x128xf32, #tpu.memory_space<vmem>>, vector<1x128xf32>
    %3 = vector.shape_cast %2 : vector<1x128xf32> to vector<128xf32>
    %c0_1 = arith.constant 0 : index
    %c0_2 = arith.constant 0 : index
    %4 = vector.load %arg3[%c0_1, %c0_2] : memref<8x128xf32, #tpu.memory_space<vmem>>, vector<1x128xf32>
    %5 = vector.shape_cast %4 : vector<1x128xf32> to vector<128xf32>
    %6 = vector.shape_cast %3 : vector<128xf32> to vector<1x128xf32>
    tpu.vector_store %arg3[%c0_1, %c0_2], %6 {strides = array<i32>} : memref<8x128xf32, #tpu.memory_space<vmem>>, vector<1x128xf32>,
    %c1 = arith.constant 1 : index
    %7 = memref.load %arg1[%c1] : memref<8xi32, #tpu.memory_space<smem>>
    %8 = arith.index_cast %7 : i32 to index
    %c0_3 = arith.constant 0 : index
    %9 = vector.load %arg2[%8, %c0_3] : memref<64x128xf32, #tpu.memory_space<vmem>>, vector<1x128xf32>
    %10 = vector.shape_cast %9 : vector<1x128xf32> to vector<128xf32>
    %c1_4 = arith.constant 1 : index
    %c0_5 = arith.constant 0 : index
    %11 = vector.load %arg3[%c1_4, %c0_5] : memref<8x128xf32, #tpu.memory_space<vmem>>, vector<1x128xf32>
    %12 = vector.shape_cast %11 : vector<1x128xf32> to vector<128xf32>
    %13 = vector.shape_cast %10 : vector<128xf32> to vector<1x128xf32>
    tpu.vector_store %arg3[%c1_4, %c0_5], %13 {strides = array<i32>} : memref<8x128xf32, #tpu.memory_space<vmem>>, vector<1x128xf32>,
    %c2 = arith.constant 2 : index
    %14 = memref.load %arg1[%c2] : memref<8xi32, #tpu.memory_space<smem>>
    %15 = arith.index_cast %14 : i32 to index
    %c0_6 = arith.constant 0 : index
    %16 = vector.load %arg2[%15, %c0_6] : memref<64x128xf32, #tpu.memory_space<vmem>>, vector<1x128xf32>
    %17 = vector.shape_cast %16 : vector<1x128xf32> to vector<128xf32>
    %c2_7 = arith.constant 2 : index
    %c0_8 = arith.constant 0 : index
    %18 = vector.load %arg3[%c2_7, %c0_8] : memref<8x128xf32, #tpu.memory_space<vmem>>, vector<1x128xf32>
    %19 = vector.shape_cast %18 : vector<1x128xf32> to vector<128xf32>
    %20 = vector.shape_cast %17 : vector<128xf32> to vector<1x128xf32>
    tpu.vector_store %arg3[%c2_7, %c0_8], %20 {strides = array<i32>} : memref<8x128xf32, #tpu.memory_space<vmem>>, vector<1x128xf32>,
    %c3 = arith.constant 3 : index
    %21 = memref.load %arg1[%c3] : memref<8xi32, #tpu.memory_space<smem>>
    %22 = arith.index_cast %21 : i32 to index
    %c0_9 = arith.constant 0 : index
    %23 = vector.load %arg2[%22, %c0_9] : memref<64x128xf32, #tpu.memory_space<vmem>>, vector<1x128xf32>
    %24 = vector.shape_cast %23 : vector<1x128xf32> to vector<128xf32>
    %c3_10 = arith.constant 3 : index
    %c0_11 = arith.constant 0 : index
    %25 = vector.load %arg3[%c3_10, %c0_11] : memref<8x128xf32, #tpu.memory_space<vmem>>, vector<1x128xf32>
    %26 = vector.shape_cast %25 : vector<1x128xf32> to vector<128xf32>
    %27 = vector.shape_cast %24 : vector<128xf32> to vector<1x128xf32>
    tpu.vector_store %arg3[%c3_10, %c0_11], %27 {strides = array<i32>} : memref<8x128xf32, #tpu.memory_space<vmem>>, vector<1x128xf32>,
    %c4 = arith.constant 4 : index
    %28 = memref.load %arg1[%c4] : memref<8xi32, #tpu.memory_space<smem>>
    %29 = arith.index_cast %28 : i32 to index
    %c0_12 = arith.constant 0 : index
    %30 = vector.load %arg2[%29, %c0_12] : memref<64x128xf32, #tpu.memory_space<vmem>>, vector<1x128xf32>
    %31 = vector.shape_cast %30 : vector<1x128xf32> to vector<128xf32>
    %c4_13 = arith.constant 4 : index
    %c0_14 = arith.constant 0 : index
    %32 = vector.load %arg3[%c4_13, %c0_14] : memref<8x128xf32, #tpu.memory_space<vmem>>, vector<1x128xf32>
    %33 = vector.shape_cast %32 : vector<1x128xf32> to vector<128xf32>
    %34 = vector.shape_cast %31 : vector<128xf32> to vector<1x128xf32>
    tpu.vector_store %arg3[%c4_13, %c0_14], %34 {strides = array<i32>} : memref<8x128xf32, #tpu.memory_space<vmem>>, vector<1x128xf32>,
    %c5 = arith.constant 5 : index
    %35 = memref.load %arg1[%c5] : memref<8xi32, #tpu.memory_space<smem>>
    %36 = arith.index_cast %35 : i32 to index
    %c0_15 = arith.constant 0 : index
    %37 = vector.load %arg2[%36, %c0_15] : memref<64x128xf32, #tpu.memory_space<vmem>>, vector<1x128xf32>
    %38 = vector.shape_cast %37 : vector<1x128xf32> to vector<128xf32>
    %c5_16 = arith.constant 5 : index
    %c0_17 = arith.constant 0 : index
    %39 = vector.load %arg3[%c5_16, %c0_17] : memref<8x128xf32, #tpu.memory_space<vmem>>, vector<1x128xf32>
    %40 = vector.shape_cast %39 : vector<1x128xf32> to vector<128xf32>
    %41 = vector.shape_cast %38 : vector<128xf32> to vector<1x128xf32>
    tpu.vector_store %arg3[%c5_16, %c0_17], %41 {strides = array<i32>} : memref<8x128xf32, #tpu.memory_space<vmem>>, vector<1x128xf32>,
    %c6 = arith.constant 6 : index
    %42 = memref.load %arg1[%c6] : memref<8xi32, #tpu.memory_space<smem>>
    %43 = arith.index_cast %42 : i32 to index
    %c0_18 = arith.constant 0 : index
    %44 = vector.load %arg2[%43, %c0_18] : memref<64x128xf32, #tpu.memory_space<vmem>>, vector<1x128xf32>
    %45 = vector.shape_cast %44 : vector<1x128xf32> to vector<128xf32>
    %c6_19 = arith.constant 6 : index
    %c0_20 = arith.constant 0 : index
    %46 = vector.load %arg3[%c6_19, %c0_20] : memref<8x128xf32, #tpu.memory_space<vmem>>, vector<1x128xf32>
    %47 = vector.shape_cast %46 : vector<1x128xf32> to vector<128xf32>
    %48 = vector.shape_cast %45 : vector<128xf32> to vector<1x128xf32>
    tpu.vector_store %arg3[%c6_19, %c0_20], %48 {strides = array<i32>} : memref<8x128xf32, #tpu.memory_space<vmem>>, vector<1x128xf32>,
    %c7 = arith.constant 7 : index
    %49 = memref.load %arg1[%c7] : memref<8xi32, #tpu.memory_space<smem>>
    %50 = arith.index_cast %49 : i32 to index
    %c0_21 = arith.constant 0 : index
    %51 = vector.load %arg2[%50, %c0_21] : memref<64x128xf32, #tpu.memory_space<vmem>>, vector<1x128xf32>
    %52 = vector.shape_cast %51 : vector<1x128xf32> to vector<128xf32>
    %c7_22 = arith.constant 7 : index
    %c0_23 = arith.constant 0 : index
    %53 = vector.load %arg3[%c7_22, %c0_23] : memref<8x128xf32, #tpu.memory_space<vmem>>, vector<1x128xf32>
    %54 = vector.shape_cast %53 : vector<1x128xf32> to vector<128xf32>
    %55 = vector.shape_cast %52 : vector<128xf32> to vector<1x128xf32>
    tpu.vector_store %arg3[%c7_22, %c0_23], %55 {strides = array<i32>} : memref<8x128xf32, #tpu.memory_space<vmem>>, vector<1x128xf32>,
    return
  }
  func.func @transform_0(%arg0: i32, %arg1: memref<8xi32, #tpu.memory_space<smem>>) -> (i32, i32) {
    %c0_i32 = arith.constant 0 : i32
    %c0_i32_0 = arith.constant 0 : i32
    %c0_i32_1 = arith.constant 0 : i32
    return %c0_i32, %c0_i32_0 : i32, i32
  }
  func.func @transform_1(%arg0: i32, %arg1: memref<8xi32, #tpu.memory_space<smem>>) -> (i32, i32) {
    %c0_i32 = arith.constant 0 : i32
    %c0_i32_0 = arith.constant 0 : i32
    %c0_i32_1 = arith.constant 0 : i32
    return %c0_i32, %c0_i32_0 : i32, i32
  }
}

</mosaic_0001>

<llo_original>
// kernel: tpu_custom_call.1
$region0: #{tpu_custom_call.1}
  #allocation0 [shape = 'u32[]', space=smem, size = 0x4, offset = 0x4, fixed_abs, tag = 'smem constant byte address 0x4 - core index']
  #allocation1 [shape = 'u32[144,128]{1,0:T(1,128)}', space=vmem, size = 0x12000, scoped, tag = 'internal scratch']
  #allocation2 [shape = 's32[1]{0}', space=sflag, size = 0x4, scoped, tag = 'scoped memory for tpu_custom_call.1']
  #allocation3 [shape = 'u8[512]{0}', space=smem, size = 0x200, scoped, tag = 'prefetched SMEM operand 0']
  %s0 = inlined_call_operand.hbm [shape: s32[8], index: 0, kind: input, shape index: {}]
  %s1 = inlined_call_operand.hbm [shape: f32[64,128], index: 1, kind: input, shape index: {}]
  %s2 = inlined_call_operand.hbm [shape: f32[8,128], index: 2, kind: output, shape index: {}]
  %s3 = sld [smem:[#allocation0]]
  $region18: #{tpu_custom_call.1} parent=0
    _
  %s5 = ssub.s32 1, %s3
  %s6 = scalar_select 0, %s5, %s3
  %8 = dma.hbm_to_smem %s0, 16, [#allocation3], [#allocation2]
  %9 = dma.done [#allocation2], 16
  %10 = sfence
  $region1: #{tpu_custom_call.1} parent=0
    #allocation4 [shape = 'u8[32768]{0}', space=vmem, size = 0x8000, scoped, tag = 'input window, operand 1, single buffered']
    #allocation5 [shape = 's32[1]{0}', space=sflag, size = 0x4, scoped, tag = 'scoped memory for tpu_custom_call.1']
    #allocation6 [shape = 's32[1]{0}', space=sflag, size = 0x4, scoped, tag = 'scoped memory for tpu_custom_call.1']
    #allocation7 [shape = 'u8[4096]{0}', space=vmem, size = 0x1000, scoped, tag = 'output window, operand 0, single buffered']
    %11 = vsyncpa [#allocation5], 0
    %12 = vsyncpa [#allocation6], 0
    // Predicated region
    $region2: #{tpu_custom_call.1} parent=1 // pred_check
      _
    $region3: #{tpu_custom_call.1} parent=1 // pred_check_branch
      %14 = sbr.rel (0) target = $region5
    $region4: #{tpu_custom_call.1} parent=1 // pred_region
      %s16 = ssub.s32 1024, 1024
      %17 = vsyncadd [#allocation5], %s16
      %s18 = sshll.u32 [#allocation4], 4
      %s19 = int_to_ptr.vmem [resolvable:$true] %s18
      %24 = dma.hbm_to_vmem [thread:$0]  %s1, 1024, %s19, [#allocation5], 128, 128, 8
    $region5: #{tpu_custom_call.1} parent=1 // pred_fallthru
      _
    // Predicated region
    $region6: #{tpu_custom_call.1} parent=1 // pred_check
      _
    $region7: #{tpu_custom_call.1} parent=1 // pred_check_branch
      %26 = sbr.rel (0) target = $region9
    $region8: #{tpu_custom_call.1} parent=1 // pred_region
      %27 = dma.done [#allocation5], 1024
    $region9: #{tpu_custom_call.1} parent=1 // pred_fallthru
      _
    %s28 = sld [smem:[#allocation3]]
    %s29 = scalar_lea.vmem [#allocation4], %s28
    %v30 = vld [vmem:[%s29] sm:$0x1]
    %31 = vst [vmem:[#allocation7] sm:$0x1] %v30
    %s32 = sld [smem:[#allocation3 + $0x1]]
    %s33 = scalar_lea.vmem [#allocation4], %s32
    %v34 = vld [vmem:[%s33] sm:$0x1]
    %35 = vst [vmem:[#allocation7 + $0x1] sm:$0x1] %v34
    %s36 = sld [smem:[#allocation3 + $0x2]]
    %s37 = scalar_lea.vmem [#allocation4], %s36
    %v38 = vld [vmem:[%s37] sm:$0x1]
    %39 = vst [vmem:[#allocation7 + $0x2] sm:$0x1] %v38
    %s40 = sld [smem:[#allocation3 + $0x3]]
    %s41 = scalar_lea.vmem [#allocation4], %s40
    %v42 = vld [vmem:[%s41] sm:$0x1]
    %43 = vst [vmem:[#allocation7 + $0x3] sm:$0x1] %v42
    %s44 = sld [smem:[#allocation3 + $0x4]]
    %s45 = scalar_lea.vmem [#allocation4], %s44
    %v46 = vld [vmem:[%s45] sm:$0x1]
    %47 = vst [vmem:[#allocation7 + $0x4] sm:$0x1] %v46
    %s48 = sld [smem:[#allocation3 + $0x5]]
    %s49 = scalar_lea.vmem [#allocation4], %s48
    %v50 = vld [vmem:[%s49] sm:$0x1]
    %51 = vst [vmem:[#allocation7 + $0x5] sm:$0x1] %v50
    %s52 = sld [smem:[#allocation3 + $0x6]]
    %s53 = scalar_lea.vmem [#allocation4], %s52
    %v54 = vld [vmem:[%s53] sm:$0x1]
    %55 = vst [vmem:[#allocation7 + $0x6] sm:$0x1] %v54
    %s56 = sld [smem:[#allocation3 + $0x7]]
    %s57 = scalar_lea.vmem [#allocation4], %s56
    %v58 = vld [vmem:[%s57] sm:$0x1]
    %59 = vst [vmem:[#allocation7 + $0x7] sm:$0x1] %v58
    // Predicated region
    $region10: #{tpu_custom_call.1} parent=1 // pred_check
      _
    $region11: #{tpu_custom_call.1} parent=1 // pred_check_branch
      %61 = sbr.rel (0) target = $region13
    $region12: #{tpu_custom_call.1} parent=1 // pred_region
      %s63 = ssub.s32 128, 128
      %64 = vsyncadd [#allocation6], %s63
      %s66 = sshll.u32 [#allocation7], 4
      %s67 = int_to_ptr.vmem [resolvable:$true] %s66
      %69 = dma.vmem_to_hbm [thread:$0]  %s67, 128, %s2, [#allocation6]
    $region13: #{tpu_custom_call.1} parent=1 // pred_fallthru
      _
    // Predicated region
    $region14: #{tpu_custom_call.1} parent=1 // pred_check
      _
    $region15: #{tpu_custom_call.1} parent=1 // pred_check_branch
      %71 = sbr.rel (0) target = $region17
    $region16: #{tpu_custom_call.1} parent=1 // pred_region
      %72 = dma.done [#allocation6], 128
    $region17: #{tpu_custom_call.1} parent=1 // pred_fallthru
      _
    %73 = vsyncpa [#allocation5], 1
    %74 = vsyncpa [#allocation6], 1

</llo_original>
